<compile_context>
chip_gen: v7x
topology: tpu7x:2x2x1
jax: 0.10.0
libtpu: 0.0.40
codegen_flags: <defaults>
</compile_context>

<pallas_src>
import functools

import jax
import jax.numpy as jnp
from jax.experimental import pallas as pl
from jax.experimental.pallas import tpu as pltpu

_SUBLANE = 8
_LANE = 128
# Bounds the per-step unrolled lane-fold loop in the tiled kernel (TS <= 8192:
# 32 KiB contiguous per-row DMA segments for f32, 16 KiB for bf16).
_MAX_LANE_TILES = 64
# Conservative per-input-block byte budget / scoped-VMEM limit: double
# buffering => ~12 MiB, safe under v5e/v6e scoped defaults (raised) and v7x's
# 64 MiB physical VMEM.
_DEFAULT_BLOCK_BYTES = 6 * 1024 * 1024
_DEFAULT_VMEM_LIMIT = 32 * 1024 * 1024
# Bigger-VMEM parts (v5e/v6e: 128 MiB per core) can take larger blocks.
_BIG_BLOCK_BYTES = 12 * 1024 * 1024
_BIG_VMEM_LIMIT = 48 * 1024 * 1024


def _round_up(x, m):
    return -(-x // m) * m


def _sublane_pack(itemsize):
    # Sub-32-bit dtypes pack along sublanes: f32 -> 8, bf16/f16 -> 16, int8 -> 32.
    return max(_SUBLANE, 32 // itemsize)


def _vmem_budget():
    """(per-input-block byte budget, scoped VMEM limit), generation-aware.

    The conservative default (6 MiB block / 32 MiB limit) is safe on v5e
    (16 MiB scoped default, raised here), v6e and v7x (64 MiB physical VMEM).
    On large-VMEM parts we allow bigger blocks; either choice is already past
    the HBM-bandwidth plateau, so this is only a marginal win.
    """
    block, limit = _DEFAULT_BLOCK_BYTES, _DEFAULT_VMEM_LIMIT
    try:
        vmem = pltpu.get_tpu_info().vmem_capacity_bytes
        if vmem >= 100 * 1024 * 1024:
            block, limit = _BIG_BLOCK_BYTES, _BIG_VMEM_LIMIT
    except Exception:
        pass
    return block, limit


def _choose_tiles(rows, s, itemsize, block_bytes):
    """Pick (TR, TS, tiled_S) under the per-block byte budget."""
    pack = _sublane_pack(itemsize)
    rows_pad = _round_up(rows, pack)

    def _core_split_cap(tr):
        # v7x megacore: the row axis is the only 'parallel' grid axis; make
        # sure it yields >= 2 blocks whenever possible so the second
        # TensorCore isn't idle.  Harmless on single-TC parts.
        if rows > pack:
            tr = min(tr, _round_up(-(-rows // 2), pack))
        return max(pack, tr)

    # Path A: whole reduction axis resident in one block.  Row tile grows
    # straight from the byte budget (no fixed 1024-row cap).
    if pack * s * itemsize <= block_bytes:
        tr = (block_bytes // (s * itemsize)) // pack * pack
        tr = max(pack, min(tr, rows_pad))
        return _core_split_cap(tr), s, False

    # Path B: tile the reduction axis.  TS is any multiple of 128 under the
    # budget (partial last tile is masked in-kernel, so no "divides S"
    # constraint), large enough for contiguous per-row DMA segments but
    # bounded so the in-kernel lane-fold loop stays short; the remaining
    # budget goes to rows.
    ts = min(_LANE * _MAX_LANE_TILES, _round_up(s, _LANE))
    ts = min(ts, (block_bytes // (pack * itemsize)) // _LANE * _LANE)
    ts = max(_LANE, ts)
    tr = (block_bytes // (ts * itemsize)) // pack * pack
    tr = max(pack, min(tr, rows_pad))
    return _core_split_cap(tr), ts, True


def _avgmax_full_kernel(x_ref, o_ref, *, inv_s):
    # One block holds the entire reduction axis: single-shot reduce, no scratch.
    x = x_ref[...]
    row_sum = jnp.sum(x, axis=-1, keepdims=True, dtype=jnp.float32)
    row_max = jnp.max(x, axis=-1, keepdims=True).astype(jnp.float32)
    o_ref[...] = (0.5 * (row_sum * inv_s + row_max)).astype(o_ref.dtype)


def _avgmax_tiled_kernel(x_ref, o_ref, sum_ref, max_ref, *,
                         inv_s, s_total, ts, needs_mask):
    # Grid = (row tiles [parallel], S tiles [arbitrary]).
    # Lane-dense (TR, 128) f32 running sum/max; the single cross-lane (XLU)
    # reduce + avg/max combine happen only at the last k step.
    k = pl.program_id(1)
    tr = x_ref.shape[0]
    nlt = ts // _LANE

    @pl.when(k == 0)
    def _init():
        sum_ref[...] = jnp.zeros_like(sum_ref)
        max_ref[...] = jnp.full_like(max_ref, -jnp.inf)

    if needs_mask:
        # Columns >= S of the last (partial) k tile contain garbage from the
        # boundary DMA: they must contribute 0 to the sum and -inf to the max.
        # On non-final tiles rem >= ts, so the mask is all-true there.
        rem = s_total - k * ts
        lane_ids = jax.lax.broadcasted_iota(jnp.int32, (tr, _LANE), 1)

    psum = jnp.zeros((tr, _LANE), jnp.float32)
    pmax = jnp.full((tr, _LANE), -jnp.inf, jnp.float32)
    for j in range(nlt):  # static unroll; VPU-only adds/maxes, no XLU per step
        blk = x_ref[:, j * _LANE:(j + 1) * _LANE]
        if needs_mask:
            valid = (lane_ids + (j * _LANE)) < rem
            blk_sum = jnp.where(valid, blk, jnp.zeros_like(blk))
            blk_max = jnp.where(valid, blk, jnp.full_like(blk, -jnp.inf))
        else:
            blk_sum = blk
            blk_max = blk
        psum = psum + blk_sum.astype(jnp.float32)
        pmax = jnp.maximum(pmax, blk_max.astype(jnp.float32))

    sum_ref[...] += psum
    max_ref[...] = jnp.maximum(max_ref[...], pmax)

    @pl.when(k == pl.num_programs(1) - 1)
    def _finalize():
        row_sum = jnp.sum(sum_ref[...], axis=-1, keepdims=True)
        row_max = jnp.max(max_ref[...], axis=-1, keepdims=True)
        # Average divides by the FULL S (masked columns contributed 0).
        o_ref[...] = (0.5 * (row_sum * inv_s + row_max)).astype(o_ref.dtype)


def adaptive_avgmax_pool3d(x, output_size=1, *, _block_bytes_override=None):
    """0.5 * (adaptive_avg_pool3d(x, 1) + adaptive_max_pool3d(x, 1)).

    x: (N, C, D, H, W). Returns (N, C, 1, 1, 1), same dtype as x.
    """
    # TODO(synk): general adaptive output_size > 1 (requires per-output-cell
    # variable-extent windows); only global pooling (output_size=1) implemented.
    assert output_size == 1 or output_size == (1, 1, 1)

    N, C, D, H, W = x.shape
    S = D * H * W
    rows = N * C
    x2 = x.reshape(rows, S)

    itemsize = jnp.dtype(x.dtype).itemsize
    block_bytes, vmem_limit = _vmem_budget()
    if _block_bytes_override is not None:  # test hook: force the tiled path
        block_bytes = _block_bytes_override
    tr, ts, tiled = _choose_tiles(rows, S, itemsize, block_bytes)
    inv_s = 1.0 / S

    if not tiled:
        out = pl.pallas_call(
            functools.partial(_avgmax_full_kernel, inv_s=inv_s),
            out_shape=jax.ShapeDtypeStruct((rows, 1), x.dtype),
            grid=(pl.cdiv(rows, tr),),
            in_specs=[pl.BlockSpec((tr, S), lambda i: (i, 0))],
            out_specs=pl.BlockSpec((tr, 1), lambda i: (i, 0)),
            compiler_params=pltpu.CompilerParams(
                dimension_semantics=("parallel",),
                vmem_limit_bytes=vmem_limit,
            ),
        )(x2)
    else:
        # TODO(synk): v7x small-rows/huge-S regime (N*C <= sublane pack) still
        # leaves the second TensorCore idle; a 2-way core-split over S with a
        # tiny jnp combine epilogue would recover ~2x there (rare for a VGG
        # head, where N*C is large).
        needs_mask = (S % ts) != 0
        out = pl.pallas_call(
            functools.partial(_avgmax_tiled_kernel, inv_s=inv_s, s_total=S,
                              ts=ts, needs_mask=needs_mask),
            out_shape=jax.ShapeDtypeStruct((rows, 1), x.dtype),
            grid=(pl.cdiv(rows, tr), pl.cdiv(S, ts)),
            in_specs=[pl.BlockSpec((tr, ts), lambda i, k: (i, k))],
            out_specs=pl.BlockSpec((tr, 1), lambda i, k: (i, 0)),
            scratch_shapes=[
                pltpu.VMEM((tr, _LANE), jnp.float32),  # lane-dense running sum
                pltpu.VMEM((tr, _LANE), jnp.float32),  # lane-dense running max
            ],
            compiler_params=pltpu.CompilerParams(
                dimension_semantics=("parallel", "arbitrary"),
                vmem_limit_bytes=vmem_limit,
            ),
        )(x2)

    return out.reshape(N, C, 1, 1, 1)


class AdaptiveAvgMaxPool3d:
    def __init__(self, output_size=1):
        self.output_size = output_size

    def __call__(self, x):
        return adaptive_avgmax_pool3d(x, self.output_size)


def _reference(x):
    return 0.5 * (
        jnp.mean(x, axis=(2, 3, 4), keepdims=True)
        + jnp.max(x, axis=(2, 3, 4), keepdims=True)
    )


if __name__ == "__main__":
    key = jax.random.PRNGKey(0)

    # 1) Small NCDHW input (batch=2, channels=4, D=4, H=8, W=8): single-pass path.
    x = jax.random.normal(key, (2, 4, 4, 8, 8), dtype=jnp.float32)
    module = AdaptiveAvgMaxPool3d(output_size=1)
    y = jax.block_until_ready(module(x))
    ref = _reference(x)
    assert y.shape == (2, 4, 1, 1, 1), y.shape
    assert y.dtype == x.dtype
    assert jnp.allclose(y, ref, atol=1e-5, rtol=1e-5)

    # 2) Rows (N*C=6) not sublane-aligned: masked boundary row block.
    x2 = jax.random.normal(jax.random.PRNGKey(0), (2, 3, 4, 8, 8), dtype=jnp.float32)
    y2 = jax.block_until_ready(adaptive_avgmax_pool3d(x2))
    assert y2.shape == (2, 3, 1, 1, 1), y2.shape
    assert jnp.allclose(y2, _reference(x2), atol=1e-5, rtol=1e-5)

    # 3) Force the S-tiled + masked-partial-k-tile kernel at a small shape by
    #    shrinking the per-block budget (same code path as huge 3D volumes).
    x3 = jax.random.normal(jax.random.PRNGKey(0), (2, 3, 5, 7, 9), dtype=jnp.float32)
    y3 = jax.block_until_ready(
        adaptive_avgmax_pool3d(x3, _block_bytes_override=8 * 1024))
    assert y3.shape == (2, 3, 1, 1, 1), y3.shape
    assert jnp.allclose(y3, _reference(x3), atol=1e-5, rtol=1e-5)

    # 4) bf16 input: exercises 16-row sublane packing; f32 accumulation inside.
    xb = jax.random.normal(jax.random.PRNGKey(0), (2, 8, 4, 8, 8), dtype=jnp.bfloat16)
    yb = jax.block_until_ready(adaptive_avgmax_pool3d(xb))
    refb = _reference(xb.astype(jnp.float32)).astype(jnp.bfloat16)
    assert yb.shape == (2, 8, 1, 1, 1), yb.shape
    assert yb.dtype == jnp.bfloat16
    assert jnp.allclose(yb.astype(jnp.float32), refb.astype(jnp.float32),
                        atol=2e-2, rtol=2e-2)

    print("KERNEL_OK")
</pallas_src>

<mosaic_0001>
module attributes {stable_mosaic.version = 11 : i64} {
  func.func @_avgmax_full_kernel(%arg0: i32, %arg1: memref<8x256xf32, #tpu.memory_space<vmem>>, %arg2: memref<8x1xf32, #tpu.memory_space<vmem>>) attributes {dimension_semantics = [#tpu.dimension_semantics<parallel>], iteration_bounds = array<i64: 1>, scalar_prefetch = 0 : i64, scratch_operands = 0 : i64, tpu.core_type = #tpu.core_type<tc>, window_params = [{transform_indices = @transform_0, window_bounds = array<i64: 8, 256>}, {transform_indices = @transform_1, window_bounds = array<i64: 8, 1>}]} {
    %c0 = arith.constant 0 : index
    %c0_0 = arith.constant 0 : index
    %0 = vector.load %arg1[%c0, %c0_0] : memref<8x256xf32, #tpu.memory_space<vmem>>, vector<8x256xf32>
    %cst = arith.constant dense<0.000000e+00> : vector<8xf32>
    %1 = vector.multi_reduction <add>, %0, %cst [1] : vector<8x256xf32> to vector<8xf32>
    %2 = vector.shape_cast %1 : vector<8xf32> to vector<8x1xf32>
    %cst_1 = arith.constant dense<0xFF800000> : vector<8xf32>
    %3 = vector.multi_reduction <maximumf>, %0, %cst_1 [1] : vector<8x256xf32> to vector<8xf32>
    %4 = vector.shape_cast %3 : vector<8xf32> to vector<8x1xf32>
    %cst_2 = arith.constant 3.906250e-03 : f32
    %5 = vector.broadcast %cst_2 : f32 to vector<8x1xf32>
    %6 = arith.mulf %2, %5 : vector<8x1xf32>
    %7 = arith.addf %6, %4 : vector<8x1xf32>
    %cst_3 = arith.constant 5.000000e-01 : f32
    %8 = vector.broadcast %cst_3 : f32 to vector<8x1xf32>
    %9 = arith.mulf %8, %7 : vector<8x1xf32>
    %c0_4 = arith.constant 0 : index
    %c0_5 = arith.constant 0 : index
    %10 = vector.load %arg2[%c0_4, %c0_5] : memref<8x1xf32, #tpu.memory_space<vmem>>, vector<8x1xf32>
    tpu.vector_store %arg2[%c0_4, %c0_5], %9 {strides = array<i32>} : memref<8x1xf32, #tpu.memory_space<vmem>>, vector<8x1xf32>,
    return
  }
  func.func @transform_0(%arg0: i32) -> (i32, i32) {
    %c0_i32 = arith.constant 0 : i32
    %c0_i32_0 = arith.constant 0 : i32
    return %arg0, %c0_i32 : i32, i32
  }
  func.func @transform_1(%arg0: i32) -> (i32, i32) {
    %c0_i32 = arith.constant 0 : i32
    %c0_i32_0 = arith.constant 0 : i32
    return %arg0, %c0_i32 : i32, i32
  }
}

</mosaic_0001>

<llo_original>
// kernel: tpu_custom_call.1
$region0: #{tpu_custom_call.1}
  #allocation0 [shape = 'u32[]', space=smem, size = 0x4, offset = 0x4, fixed_abs, tag = 'smem constant byte address 0x4 - core index']
  #allocation1 [shape = 'u32[144,128]{1,0:T(1,128)}', space=vmem, size = 0x12000, scoped, tag = 'internal scratch']
  %s0 = inlined_call_operand.hbm [shape: f32[8,256], index: 0, kind: input, shape index: {}]
  %s1 = inlined_call_operand.vmem [shape: f32[8,1], index: 1, kind: output, shape index: {}]
  %s2 = sld [smem:[#allocation0]]
  $region18: #{tpu_custom_call.1} parent=0
    _
  %s4 = ssub.s32 1, %s2
  %s5 = scalar_select 0, %s4, %s2
  $region1: #{tpu_custom_call.1} parent=0
    #allocation2 [shape = 'u8[8192]{0}', space=vmem, size = 0x2000, scoped, tag = 'input window, operand 0, single buffered']
    #allocation3 [shape = 's32[1]{0}', space=sflag, size = 0x4, scoped, tag = 'scoped memory for tpu_custom_call.1']
    %6 = vsyncpa [#allocation3], 0
    // Predicated region
    $region2: #{tpu_custom_call.1} parent=1 // pred_check
      _
    $region3: #{tpu_custom_call.1} parent=1 // pred_check_branch
      %8 = sbr.rel (0) target = $region5
    $region4: #{tpu_custom_call.1} parent=1 // pred_region
      %s10 = ssub.s32 256, 256
      %11 = vsyncadd [#allocation3], %s10
      %s13 = sshll.u32 [#allocation2], 4
      %s14 = int_to_ptr.vmem [resolvable:$true] %s13
      %16 = dma.hbm_to_vmem [thread:$0]  %s0, 256, %s14, [#allocation3]
    $region5: #{tpu_custom_call.1} parent=1 // pred_fallthru
      _
    // Predicated region
    $region6: #{tpu_custom_call.1} parent=1 // pred_check
      _
    $region7: #{tpu_custom_call.1} parent=1 // pred_check_branch
      %18 = sbr.rel (0) target = $region9
    $region8: #{tpu_custom_call.1} parent=1 // pred_region
      %19 = dma.done [#allocation3], 256
    $region9: #{tpu_custom_call.1} parent=1 // pred_fallthru
      _
    %v20 = vld [vmem:[#allocation2] sm:$0xff]
    %v21 = vld [vmem:[#allocation2 + $0x8] sm:$0xff]
    %v22 = vadd.f32 %v20, %v21
    %23 = vadd.xlane.f32.xlu0 %v22
    %v24 = vpop.xlane.xlu0 %23
    %v25 = vmax.f32 %v20, %v21
    %26 = vmax.xlane.f32.xlu0 %v25
    %v27 = vpop.xlane.xlu0 %26
    %v28 = vmul.f32 %v24, 0.00390625
    %v29 = vadd.f32 %v28, %v27
    %v30 = vmul.f32 %v29, 0.5
    %vm31 = vcmask 7168
    %32 = vst.msk [vmem:[%s1] sm:$0xff] %vm31, %v30
    // Predicated region
    $region10: #{tpu_custom_call.1} parent=1 // pred_check
      _
    $region11: #{tpu_custom_call.1} parent=1 // pred_check_branch
      %34 = sbr.rel (0) target = $region13
    $region12: #{tpu_custom_call.1} parent=1 // pred_region
      _
    $region13: #{tpu_custom_call.1} parent=1 // pred_fallthru
      _
    // Predicated region
    $region14: #{tpu_custom_call.1} parent=1 // pred_check
      _
    $region15: #{tpu_custom_call.1} parent=1 // pred_check_branch
      %36 = sbr.rel (0) target = $region17
    $region16: #{tpu_custom_call.1} parent=1 // pred_region
      _
    $region17: #{tpu_custom_call.1} parent=1 // pred_fallthru
      _
    %37 = vsyncpa [#allocation3], 1

</llo_original>
